<compile_context>
chip_gen: v7x
topology: tpu7x:2x2x1
jax: 0.10.0
libtpu: 0.0.40
codegen_flags: <defaults>
</compile_context>

<pallas_src>
import math

import jax
import jax.numpy as jnp
from jax.experimental import pallas as pl
from jax.experimental.pallas import tpu as pltpu


def _bfc_kernel(x_ref, mean_t_ref, logvar_t_ref, eps_ref, o_ref,
                acc_mean_ref, acc_var_ref):
    """One (tm, tn) output tile; K is the reduction grid axis (axis 2)."""
    k = pl.program_id(2)

    @pl.when(k == 0)
    def _():
        acc_mean_ref[...] = jnp.zeros_like(acc_mean_ref)
        acc_var_ref[...] = jnp.zeros_like(acc_var_ref)

    x = x_ref[...]
    # Mean path: x @ mean.T  (weights pre-transposed to (K, N) in the wrapper)
    acc_mean_ref[...] += jnp.dot(x, mean_t_ref[...],
                                 preferred_element_type=jnp.float32)
    # Variance path: (x*x) @ exp(logvar).T ; exp fused in-kernel (EUP, hidden under MXU)
    var_t = jnp.exp(logvar_t_ref[...])
    acc_var_ref[...] += jnp.dot(x * x, var_t,
                                preferred_element_type=jnp.float32)

    @pl.when(k == pl.num_programs(2) - 1)
    def _():
        lrt_std = jnp.sqrt(1e-16 + acc_var_ref[...])
        o_ref[...] = (acc_mean_ref[...] + eps_ref[...] * lrt_std).astype(o_ref.dtype)


def _round_up(v, m):
    return ((v + m - 1) // m) * m


def bayesian_fully_connected(x, mean, logvar, eps, *, tm=256, tn=512, tk=512):
    """x: (B, in_features); mean/logvar: (out_features, in_features); eps: (B, out_features)."""
    B, K = x.shape
    N = mean.shape[0]
    dtype = x.dtype

    # --- pad to TPU-friendly, lane-dense shapes ---------------------------------
    Bp = _round_up(B, 8)       # sublane granularity for the M axis
    Kp = _round_up(K, 128)     # lane granularity for the K axis
    Np = _round_up(N, 128)     # lane-dense output (unmasked full-lane stores)

    # shrink tiles for small problems, then make padded dims tile multiples
    tm = min(tm, Bp)
    tn = min(tn, Np)
    tk = min(tk, Kp)
    Bp = _round_up(Bp, tm)
    Np = _round_up(Np, tn)
    Kp = _round_up(Kp, tk)

    # Zero-pad. Padded K columns of x are zero, so they contribute nothing to either
    # matmul (exp(0)=1 for padded logvar is harmless: multiplied by x*x == 0).
    x_p = jnp.pad(x, ((0, Bp - B), (0, Kp - K)))
    mean_t = jnp.pad(jnp.transpose(mean), ((0, Kp - K), (0, Np - N)))      # (Kp, Np)
    logvar_t = jnp.pad(jnp.transpose(logvar), ((0, Kp - K), (0, Np - N)))  # (Kp, Np)
    eps_p = jnp.pad(eps, ((0, Bp - B), (0, Np - N)))

    grid = (Bp // tm, Np // tn, Kp // tk)

    out_p = pl.pallas_call(
        _bfc_kernel,
        out_shape=jax.ShapeDtypeStruct((Bp, Np), dtype),
        grid_spec=pltpu.PrefetchScalarGridSpec(
            num_scalar_prefetch=0,
            grid=grid,
            in_specs=[
                pl.BlockSpec((tm, tk), lambda i, j, k: (i, k)),   # x
                pl.BlockSpec((tk, tn), lambda i, j, k: (k, j)),   # mean.T
                pl.BlockSpec((tk, tn), lambda i, j, k: (k, j)),   # logvar.T
                pl.BlockSpec((tm, tn), lambda i, j, k: (i, j)),   # eps
            ],
            out_specs=pl.BlockSpec((tm, tn), lambda i, j, k: (i, j)),
            scratch_shapes=[
                pltpu.VMEM((tm, tn), jnp.float32),   # mean-path accumulator
                pltpu.VMEM((tm, tn), jnp.float32),   # var-path accumulator
            ],
        ),
        compiler_params=pltpu.CompilerParams(
            dimension_semantics=("parallel", "parallel", "arbitrary"),
            vmem_limit_bytes=48 << 20,   # fits v7x's 64 MiB TC with headroom
        ),
    )(x_p, mean_t, logvar_t, eps_p)

    return out_p[:B, :N]


if __name__ == "__main__":
    # Small, deterministic problem size.
    B, in_features, out_features = 8, 32, 64

    key = jax.random.PRNGKey(0)
    k_x, k_mean, k_logvar, k_eps = jax.random.split(key, 4)

    # Deterministic parameter init mirroring reset_parameters():
    #   mean ~ U(-stdv, stdv),  logvar = log(U(0.5, 1.5)),  stdv = 1/sqrt(in_features)
    stdv = 1.0 / math.sqrt(in_features)
    mean = jax.random.uniform(
        k_mean, (out_features, in_features), jnp.float32, minval=-stdv, maxval=stdv
    )
    logvar = jnp.log(
        jax.random.uniform(
            k_logvar, (out_features, in_features), jnp.float32, minval=0.5, maxval=1.5
        )
    )

    x = jax.random.normal(k_x, (B, in_features), jnp.float32)
    # eps is the N(0,1) noise of the local-reparameterization trick
    # (torch.cuda.FloatTensor(...).normal_() in the original module).
    # TODO(synk): eps could be generated in-kernel via pltpu.prng_* if bit-parity
    #             with externally supplied noise is not required.
    eps = jax.random.normal(k_eps, (B, out_features), jnp.float32)

    out = bayesian_fully_connected(x, mean, logvar, eps)
    out = jax.block_until_ready(out)

    # Reference check in plain JAX.
    ref = x @ mean.T + eps * jnp.sqrt(1e-16 + (x * x) @ jnp.exp(logvar).T)
    assert out.shape == (B, out_features)
    assert jnp.allclose(out, ref, atol=1e-4, rtol=1e-4)

    print("KERNEL_OK")
</pallas_src>

<mosaic_0001>
module attributes {stable_mosaic.version = 11 : i64} {
  func.func @_bfc_kernel(%arg0: i32, %arg1: i32, %arg2: i32, %arg3: memref<8x128xf32, #tpu.memory_space<vmem>>, %arg4: memref<128x128xf32, #tpu.memory_space<vmem>>, %arg5: memref<128x128xf32, #tpu.memory_space<vmem>>, %arg6: memref<8x128xf32, #tpu.memory_space<vmem>>, %arg7: memref<8x128xf32, #tpu.memory_space<vmem>>, %arg8: memref<8x128xf32, #tpu.memory_space<vmem>>, %arg9: memref<8x128xf32, #tpu.memory_space<vmem>>) attributes {dimension_semantics = [#tpu.dimension_semantics<parallel>, #tpu.dimension_semantics<parallel>, #tpu.dimension_semantics<arbitrary>], iteration_bounds = array<i64: 1, 1, 1>, scalar_prefetch = 0 : i64, scratch_operands = 2 : i64, tpu.core_type = #tpu.core_type<tc>, window_params = [{transform_indices = @transform_0, window_bounds = array<i64: 8, 128>}, {transform_indices = @transform_1, window_bounds = array<i64: 128, 128>}, {transform_indices = @transform_2, window_bounds = array<i64: 128, 128>}, {transform_indices = @transform_3, window_bounds = array<i64: 8, 128>}, {transform_indices = @transform_4, window_bounds = array<i64: 8, 128>}]} {
    %c0_i32 = arith.constant 0 : i32
    %0 = arith.cmpi eq, %arg2, %c0_i32 : i32
    %1 = arith.extui %0 : i1 to i32
    %c0_i32_0 = arith.constant 0 : i32
    %2 = arith.cmpi ne, %1, %c0_i32_0 : i32
    scf.if %2 {
      %cst_17 = arith.constant 0.000000e+00 : f32
      %19 = vector.broadcast %cst_17 : f32 to vector<8x128xf32>
      %c0_18 = arith.constant 0 : index
      %c0_19 = arith.constant 0 : index
      %20 = vector.load %arg8[%c0_18, %c0_19] : memref<8x128xf32, #tpu.memory_space<vmem>>, vector<8x128xf32>
      tpu.vector_store %arg8[%c0_18, %c0_19], %19 {strides = array<i32>} : memref<8x128xf32, #tpu.memory_space<vmem>>, vector<8x128xf32>,
      %cst_20 = arith.constant 0.000000e+00 : f32
      %21 = vector.broadcast %cst_20 : f32 to vector<8x128xf32>
      %c0_21 = arith.constant 0 : index
      %c0_22 = arith.constant 0 : index
      %22 = vector.load %arg9[%c0_21, %c0_22] : memref<8x128xf32, #tpu.memory_space<vmem>>, vector<8x128xf32>
      tpu.vector_store %arg9[%c0_21, %c0_22], %21 {strides = array<i32>} : memref<8x128xf32, #tpu.memory_space<vmem>>, vector<8x128xf32>,
    } else {
    }
    %c0 = arith.constant 0 : index
    %c0_1 = arith.constant 0 : index
    %3 = vector.load %arg3[%c0, %c0_1] : memref<8x128xf32, #tpu.memory_space<vmem>>, vector<8x128xf32>
    %c0_2 = arith.constant 0 : index
    %c0_3 = arith.constant 0 : index
    %4 = vector.load %arg8[%c0_2, %c0_3] : memref<8x128xf32, #tpu.memory_space<vmem>>, vector<8x128xf32>
    %c0_4 = arith.constant 0 : index
    %c0_5 = arith.constant 0 : index
    %5 = vector.load %arg4[%c0_4, %c0_5] : memref<128x128xf32, #tpu.memory_space<vmem>>, vector<128x128xf32>
    %cst = arith.constant dense<0.000000e+00> : vector<8x128xf32>
    %6 = tpu.matmul %3, %5, %cst {dimension_numbers = #tpu.dot_dimension_numbers<[1], [0], [0], [1], [0, 0, 1, 1], [], []>} : vector<8x128xf32>, vector<128x128xf32>, vector<8x128xf32> -> vector<8x128xf32>
    %7 = arith.addf %4, %6 : vector<8x128xf32>
    %c0_6 = arith.constant 0 : index
    %c0_7 = arith.constant 0 : index
    %8 = vector.load %arg8[%c0_6, %c0_7] : memref<8x128xf32, #tpu.memory_space<vmem>>, vector<8x128xf32>
    tpu.vector_store %arg8[%c0_6, %c0_7], %7 {strides = array<i32>} : memref<8x128xf32, #tpu.memory_space<vmem>>, vector<8x128xf32>,
    %c0_8 = arith.constant 0 : index
    %c0_9 = arith.constant 0 : index
    %9 = vector.load %arg5[%c0_8, %c0_9] : memref<128x128xf32, #tpu.memory_space<vmem>>, vector<128x128xf32>
    %10 = math.exp %9 : vector<128x128xf32>
    %c0_10 = arith.constant 0 : index
    %c0_11 = arith.constant 0 : index
    %11 = vector.load %arg9[%c0_10, %c0_11] : memref<8x128xf32, #tpu.memory_space<vmem>>, vector<8x128xf32>
    %12 = arith.mulf %3, %3 : vector<8x128xf32>
    %cst_12 = arith.constant dense<0.000000e+00> : vector<8x128xf32>
    %13 = tpu.matmul %12, %10, %cst_12 {dimension_numbers = #tpu.dot_dimension_numbers<[1], [0], [0], [1], [0, 0, 1, 1], [], []>} : vector<8x128xf32>, vector<128x128xf32>, vector<8x128xf32> -> vector<8x128xf32>
    %14 = arith.addf %11, %13 : vector<8x128xf32>
    %c0_13 = arith.constant 0 : index
    %c0_14 = arith.constant 0 : index
    %15 = vector.load %arg9[%c0_13, %c0_14] : memref<8x128xf32, #tpu.memory_space<vmem>>, vector<8x128xf32>
    tpu.vector_store %arg9[%c0_13, %c0_14], %14 {strides = array<i32>} : memref<8x128xf32, #tpu.memory_space<vmem>>, vector<8x128xf32>,
    %c0_i32_15 = arith.constant 0 : i32
    %16 = arith.cmpi eq, %arg2, %c0_i32_15 : i32
    %17 = arith.extui %16 : i1 to i32
    %c0_i32_16 = arith.constant 0 : i32
    %18 = arith.cmpi ne, %17, %c0_i32_16 : i32
    scf.if %18 {
      %c0_17 = arith.constant 0 : index
      %c0_18 = arith.constant 0 : index
      %19 = vector.load %arg9[%c0_17, %c0_18] : memref<8x128xf32, #tpu.memory_space<vmem>>, vector<8x128xf32>
      %cst_19 = arith.constant 1.000000e-16 : f32
      %20 = vector.broadcast %cst_19 : f32 to vector<8x128xf32>
      %21 = arith.addf %20, %19 : vector<8x128xf32>
      %22 = math.sqrt %21 : vector<8x128xf32>
      %c0_20 = arith.constant 0 : index
      %c0_21 = arith.constant 0 : index
      %23 = vector.load %arg8[%c0_20, %c0_21] : memref<8x128xf32, #tpu.memory_space<vmem>>, vector<8x128xf32>
      %c0_22 = arith.constant 0 : index
      %c0_23 = arith.constant 0 : index
      %24 = vector.load %arg6[%c0_22, %c0_23] : memref<8x128xf32, #tpu.memory_space<vmem>>, vector<8x128xf32>
      %25 = arith.mulf %24, %22 : vector<8x128xf32>
      %26 = arith.addf %23, %25 : vector<8x128xf32>
      %c0_24 = arith.constant 0 : index
      %c0_25 = arith.constant 0 : index
      %27 = vector.load %arg7[%c0_24, %c0_25] : memref<8x128xf32, #tpu.memory_space<vmem>>, vector<8x128xf32>
      tpu.vector_store %arg7[%c0_24, %c0_25], %26 {strides = array<i32>} : memref<8x128xf32, #tpu.memory_space<vmem>>, vector<8x128xf32>,
    } else {
    }
    return
  }
  func.func @transform_0(%arg0: i32, %arg1: i32, %arg2: i32) -> (i32, i32) {
    %c0_i32 = arith.constant 0 : i32
    return %arg0, %arg2 : i32, i32
  }
  func.func @transform_1(%arg0: i32, %arg1: i32, %arg2: i32) -> (i32, i32) {
    %c0_i32 = arith.constant 0 : i32
    return %arg2, %arg1 : i32, i32
  }
  func.func @transform_2(%arg0: i32, %arg1: i32, %arg2: i32) -> (i32, i32) {
    %c0_i32 = arith.constant 0 : i32
    return %arg2, %arg1 : i32, i32
  }
  func.func @transform_3(%arg0: i32, %arg1: i32, %arg2: i32) -> (i32, i32) {
    %c0_i32 = arith.constant 0 : i32
    return %arg0, %arg1 : i32, i32
  }
  func.func @transform_4(%arg0: i32, %arg1: i32, %arg2: i32) -> (i32, i32) {
    %c0_i32 = arith.constant 0 : i32
    return %arg0, %arg1 : i32, i32
  }
}

</mosaic_0001>

<llo_original>
// kernel: tpu_custom_call.1
$region0: #{tpu_custom_call.1}
  #allocation0 [shape = 'u32[]', space=smem, size = 0x4, offset = 0x4, fixed_abs, tag = 'smem constant byte address 0x4 - core index']
  #allocation1 [shape = 'u32[144,128]{1,0:T(1,128)}', space=vmem, size = 0x12000, scoped, tag = 'internal scratch']
  #allocation2 [shape = 'f32[8,128]{1,0:T(8,128)}', space=vmem, size = 0x1000, scoped, tag = 'scratch operand']
  #allocation3 [shape = 'f32[8,128]{1,0:T(8,128)}', space=vmem, size = 0x1000, scoped, tag = 'scratch operand']
  %s0 = inlined_call_operand.hbm [shape: f32[8,128], index: 0, kind: input, shape index: {}]
  %s1 = inlined_call_operand.hbm [shape: f32[128,128], index: 1, kind: input, shape index: {}]
  %s2 = inlined_call_operand.hbm [shape: f32[128,128], index: 2, kind: input, shape index: {}]
  %s3 = inlined_call_operand.vmem [shape: f32[8,128], index: 3, kind: input, shape index: {}]
  %s4 = inlined_call_operand.hbm [shape: f32[8,128], index: 4, kind: output, shape index: {}]
  %s5 = sld [smem:[#allocation0]]
  $region46: #{tpu_custom_call.1} parent=0
    _
  %s7 = ssub.s32 1, %s5
  %s8 = scalar_select 0, %s7, %s5
  $region1: #{tpu_custom_call.1} parent=0
    #allocation4 [shape = 'u8[4096]{0}', space=vmem, size = 0x1000, scoped, tag = 'input window, operand 0, single buffered']
    #allocation5 [shape = 's32[1]{0}', space=sflag, size = 0x4, scoped, tag = 'scoped memory for tpu_custom_call.1']
    #allocation6 [shape = 's32[1]{0}', space=sflag, size = 0x4, scoped, tag = 'scoped memory for tpu_custom_call.1']
    #allocation7 [shape = 'u8[65536]{0}', space=vmem, size = 0x10000, scoped, tag = 'input window, operand 1, single buffered']
    #allocation8 [shape = 's32[1]{0}', space=sflag, size = 0x4, scoped, tag = 'scoped memory for tpu_custom_call.1']
    #allocation9 [shape = 'u8[65536]{0}', space=vmem, size = 0x10000, scoped, tag = 'input window, operand 2, single buffered']
    #allocation10 [shape = 'u8[4096]{0}', space=vmem, size = 0x1000, scoped, tag = 'output window, operand 0, single buffered']
    %9 = vsyncpa [#allocation5], 0
    %10 = vsyncpa [#allocation8], 0
    %11 = vsyncpa [#allocation6], 0
    // Predicated region
    $region2: #{tpu_custom_call.1} parent=1 // pred_check
      _
    $region3: #{tpu_custom_call.1} parent=1 // pred_check_branch
      %13 = sbr.rel (0) target = $region5
    $region4: #{tpu_custom_call.1} parent=1 // pred_region
      %s15 = ssub.s32 128, 128
      %16 = vsyncadd [#allocation5], %s15
      %s18 = sshll.u32 [#allocation4], 4
      %s19 = int_to_ptr.vmem [resolvable:$true] %s18
      %21 = dma.hbm_to_vmem [thread:$0]  %s0, 128, %s19, [#allocation5]
    $region5: #{tpu_custom_call.1} parent=1 // pred_fallthru
      _
    // Predicated region
    $region6: #{tpu_custom_call.1} parent=1 // pred_check
      _
    $region7: #{tpu_custom_call.1} parent=1 // pred_check_branch
      %23 = sbr.rel (0) target = $region9
    $region8: #{tpu_custom_call.1} parent=1 // pred_region
      %s25 = ssub.s32 2048, 2048
      %26 = vsyncadd [#allocation8], %s25
      %s27 = sshll.u32 [#allocation7], 4
      %s28 = int_to_ptr.vmem [resolvable:$true] %s27
      %33 = dma.hbm_to_vmem [thread:$0]  %s1, 2048, %s28, [#allocation8], 128, 128, 8
    $region9: #{tpu_custom_call.1} parent=1 // pred_fallthru
      _
    // Predicated region
    $region10: #{tpu_custom_call.1} parent=1 // pred_check
      _
    $region11: #{tpu_custom_call.1} parent=1 // pred_check_branch
      %35 = sbr.rel (0) target = $region13
    $region12: #{tpu_custom_call.1} parent=1 // pred_region
      %s37 = ssub.s32 2048, 2048
      %38 = vsyncadd [#allocation8], %s37
      %s39 = sshll.u32 [#allocation9], 4
      %s40 = int_to_ptr.vmem [resolvable:$true] %s39
      %45 = dma.hbm_to_vmem [thread:$0]  %s2, 2048, %s40, [#allocation8], 128, 128, 8
    $region13: #{tpu_custom_call.1} parent=1 // pred_fallthru
      _
    // Predicated region
    $region14: #{tpu_custom_call.1} parent=1 // pred_check
      _
    $region15: #{tpu_custom_call.1} parent=1 // pred_check_branch
      %47 = sbr.rel (0) target = $region17
    $region16: #{tpu_custom_call.1} parent=1 // pred_region
      _
    $region17: #{tpu_custom_call.1} parent=1 // pred_fallthru
      _
    // Predicated region
    $region18: #{tpu_custom_call.1} parent=1 // pred_check
      _
    $region19: #{tpu_custom_call.1} parent=1 // pred_check_branch
      %49 = sbr.rel (0) target = $region21
    $region20: #{tpu_custom_call.1} parent=1 // pred_region
      %50 = dma.done [#allocation5], 128
    $region21: #{tpu_custom_call.1} parent=1 // pred_fallthru
      _
    // Predicated region
    $region22: #{tpu_custom_call.1} parent=1 // pred_check
      _
    $region23: #{tpu_custom_call.1} parent=1 // pred_check_branch
      %52 = sbr.rel (0) target = $region25
    $region24: #{tpu_custom_call.1} parent=1 // pred_region
      %53 = dma.done [#allocation8], 2048
    $region25: #{tpu_custom_call.1} parent=1 // pred_fallthru
      _
    // Predicated region
    $region26: #{tpu_custom_call.1} parent=1 // pred_check
      _
    $region27: #{tpu_custom_call.1} parent=1 // pred_check_branch
      %55 = sbr.rel (0) target = $region29
    $region28: #{tpu_custom_call.1} parent=1 // pred_region
      %56 = dma.done [#allocation8], 2048
    $region29: #{tpu_custom_call.1} parent=1 // pred_fallthru
      _
    %p57 = scmp.eq.s32.totalorder 0, 0
    // Predicated region
    $region30: #{tpu_custom_call.1} parent=1 // pred_check
      %p58 = pneg %p57
    $region31: #{tpu_custom_call.1} parent=1 // pred_check_branch
      %60 = sbr.rel (%p58) target = $region33
    $region32: #{tpu_custom_call.1} parent=1 // pred_region
      %61 = vst [vmem:[#allocation2] sm:$0xff] 0.0
      %62 = vst [vmem:[#allocation3] sm:$0xff] 0.0
    $region33: #{tpu_custom_call.1} parent=1 // pred_fallthru
      _
    %v63 = vld [vmem:[#allocation4] sm:$0xff]
    %v64 = vld [vmem:[#allocation2] sm:$0xff]
    %v65 = vld [vmem:[#allocation7] sm:$0xff]
    %v66 = vld [vmem:[#allocation7 + $0x8] sm:$0xff]
    %v67 = vld [vmem:[#allocation7 + $0x10] sm:$0xff]
    %v68 = vld [vmem:[#allocation7 + $0x18] sm:$0xff]
    %v69 = vld [vmem:[#allocation7 + $0x20] sm:$0xff]
    %v70 = vld [vmem:[#allocation7 + $0x28] sm:$0xff]
    %v71 = vld [vmem:[#allocation7 + $0x30] sm:$0xff]
    %v72 = vld [vmem:[#allocation7 + $0x38] sm:$0xff]
    %v73 = vld [vmem:[#allocation7 + $0x40] sm:$0xff]
    %v74 = vld [vmem:[#allocation7 + $0x48] sm:$0xff]
    %v75 = vld [vmem:[#allocation7 + $0x50] sm:$0xff]
    %v76 = vld [vmem:[#allocation7 + $0x58] sm:$0xff]
    %v77 = vld [vmem:[#allocation7 + $0x60] sm:$0xff]
    %v78 = vld [vmem:[#allocation7 + $0x68] sm:$0xff]
    %v79 = vld [vmem:[#allocation7 + $0x70] sm:$0xff]
    %v80 = vld [vmem:[#allocation7 + $0x78] sm:$0xff]
    %81 = vmatprep.subr.mxu0 0.0
    %82 = vmatpush1.msra.mxu0 %v65
    %83 = vmatprep.subr.mxu0 0.0
    %84 = vmatpush1.msra.mxu0 %v66
    %85 = vmatprep.subr.mxu0 0.0
    %86 = vmatpush1.msra.mxu0 %v67
    %87 = vmatprep.subr.mxu0 0.0
    %88 = vmatpush1.msra.mxu0 %v68
    %89 = vmatprep.subr.mxu0 0.0
    %90 = vmatpush1.msra.mxu0 %v69
    %91 = vmatprep.subr.mxu0 0.0
    %92 = vmatpush1.msra.mxu0 %v70
    %93 = vmatprep.subr.mxu0 0.0
    %94 = vmatpush1.msra.mxu0 %v71
    %95 = vmatprep.subr.mxu0 0.0
    %96 = vmatpush1.msra.mxu0 %v72
    %97 = vmatprep.subr.mxu0 0.0
    %98 = vmatpush1.msra.mxu0 %v73
    %99 = vmatprep.subr.mxu0 0.0
    %100 = vmatpush1.msra.mxu0 %v74
    %101 = vmatprep.subr.mxu0 0.0
    %102 = vmatpush1.msra.mxu0 %v75
    %103 = vmatprep.subr.mxu0 0.0
    %104 = vmatpush1.msra.mxu0 %v76
    %105 = vmatprep.subr.mxu0 0.0
    %106 = vmatpush1.msra.mxu0 %v77
    %107 = vmatprep.subr.mxu0 0.0
    %108 = vmatpush1.msra.mxu0 %v78
    %109 = vmatprep.subr.mxu0 0.0
    %110 = vmatpush1.msra.mxu0 %v79
    %111 = vmatprep.subr.mxu0 0.0
    %112 = vmatpush1.msra.mxu0 %v80
    %113 = vmatprep.subr.mxu0 0.0
    %114 = vmatpush1.msra.mxu0 0.0
    %115 = vmatprep.subr.mxu0 0.0
    %116 = vmatpush1.msra.mxu0 0.0
    %117 = vmatprep.subr.mxu0 0.0
    %118 = vmatpush1.msra.mxu0 0.0
    %119 = vmatprep.subr.mxu0 0.0
    %120 = vmatpush1.msra.mxu0 0.0
    %121 = vmatprep.subr.mxu0 0.0
    %122 = vmatpush1.msra.mxu0 0.0
    %123 = vmatprep.subr.mxu0 0.0
    %124 = vmatpush1.msra.mxu0 0.0
    %125 = vmatprep.subr.mxu0 0.0
    %126 = vmatpush1.msra.mxu0 0.0
    %127 = vmatprep.subr.mxu0 0.0
    %128 = vmatpush1.msra.mxu0 0.0
    %129 = vmatprep.subr.mxu0 0.0
    %130 = vmatpush1.msra.mxu0 0.0
    %131 = vmatprep.subr.mxu0 0.0
    %132 = vmatpush1.msra.mxu0 0.0
    %133 = vmatprep.subr.mxu0 0.0
    %134 = vmatpush1.msra.mxu0 0.0
    %135 = vmatprep.subr.mxu0 0.0
    %136 = vmatpush1.msra.mxu0 0.0
    %137 = vmatprep.subr.mxu0 0.0
    %138 = vmatpush1.msra.mxu0 0.0
    %139 = vmatprep.subr.mxu0 0.0
    %140 = vmatpush1.msra.mxu0 0.0
    %141 = vmatprep.subr.mxu0 0.0
    %142 = vmatpush1.msra.mxu0 0.0
    %143 = vmatprep.subr.mxu0 0.0
    %144 = vmatpush1.msra.mxu0 0.0
    %145 = vmatprep.mubr.f32.mxu0 0.0
    %146 = vmatmul.mubr.f32.gmra.mrb[0].mxu0 %v63
    %v147 = vpop.f32.mrb[0].mxu0
    %v148 = vadd.f32 0.0, %v147
    %v149 = vpop.f32.mrb[0].mxu0
    %150 = vdwg.mxu0
    %v151 = vadd.f32 %v64, %v148
    %152 = vst [vmem:[#allocation2] sm:$0xff] %v151
    %v153 = vld [vmem:[#allocation9] sm:$0xff]
    %v154 = vld [vmem:[#allocation9 + $0x8] sm:$0xff]
    %v155 = vld [vmem:[#allocation9 + $0x10] sm:$0xff]
    %v156 = vld [vmem:[#allocation9 + $0x18] sm:$0xff]
    %v157 = vld [vmem:[#allocation9 + $0x20] sm:$0xff]
    %v158 = vld [vmem:[#allocation9 + $0x28] sm:$0xff]
    %v159 = vld [vmem:[#allocation9 + $0x30] sm:$0xff]
    %v160 = vld [vmem:[#allocation9 + $0x38] sm:$0xff]
    %v161 = vld [vmem:[#allocation9 + $0x40] sm:$0xff]
    %v162 = vld [vmem:[#allocation9 + $0x48] sm:$0xff]
    %v163 = vld [vmem:[#allocation9 + $0x50] sm:$0xff]
    %v164 = vld [vmem:[#allocation9 + $0x58] sm:$0xff]
    %v165 = vld [vmem:[#allocation9 + $0x60] sm:$0xff]
    %v166 = vld [vmem:[#allocation9 + $0x68] sm:$0xff]
    %v167 = vld [vmem:[#allocation9 + $0x70] sm:$0xff]
    %v168 = vld [vmem:[#allocation9 + $0x78] sm:$0xff]
    %v169 = vmul.f32 %v153, 1.442695
    %v170 = vpow.pop %v169
    %v171 = vmul.f32 %v154, 1.442695
    %v172 = vpow.pop %v171
    %v173 = vmul.f32 %v155, 1.442695
    %v174 = vpow.pop %v173
    %v175 = vmul.f32 %v156, 1.442695
    %v176 = vpow.pop %v175
    %v177 = vmul.f32 %v157, 1.442695
    %v178 = vpow.pop %v177
    %v179 = vmul.f32 %v158, 1.442695
    %v180 = vpow.pop %v179
    %v181 = vmul.f32 %v159, 1.442695
    %v182 = vpow.pop %v181
    %v183 = vmul.f32 %v160, 1.442695
    %v184 = vpow.pop %v183
    %v185 = vmul.f32 %v161, 1.442695
    %v186 = vpow.pop %v185
    %v187 = vmul.f32 %v162, 1.442695
    %v188 = vpow.pop %v187
    %v189 = vmul.f32 %v163, 1.442695
    %v190 = vpow.pop %v189
    %v191 = vmul.f32 %v164, 1.442695
    %v192 = vpow.pop %v191
    %v193 = vmul.f32 %v165, 1.442695
    %v194 = vpow.pop %v193
    %v195 = vmul.f32 %v166, 1.442695
    %v196 = vpow.pop %v195
    %v197 = vmul.f32 %v167, 1.442695
    %v198 = vpow.pop %v197
    %v199 = vmul.f32 %v168, 1.442695
    %v200 = vpow.pop %v199
    %v201 = vld [vmem:[#allocation3] sm:$0xff]
    %v202 = vmul.f32 %v63, %v63
    %203 = vmatprep.subr.mxu0 0.0
    %204 = vmatpush1.msra.mxu0 %v170
    %205 = vmatprep.subr.mxu0 0.0
    %206 = vmatpush1.msra.mxu0 %v172
    %207 = vmatprep.subr.mxu0 0.0
    %208 = vmatpush1.msra.mxu0 %v174
    %209 = vmatprep.subr.mxu0 0.0
    %210 = vmatpush1.msra.mxu0 %v176
    %211 = vmatprep.subr.mxu0 0.0
    %212 = vmatpush1.msra.mxu0 %v178
    %213 = vmatprep.subr.mxu0 0.0
    %214 = vmatpush1.msra.mxu0 %v180
    %215 = vmatprep.subr.mxu0 0.0
    %216 = vmatpush1.msra.mxu0 %v182
    %217 = vmatprep.subr.mxu0 0.0
    %218 = vmatpush1.msra.mxu0 %v184
    %219 = vmatprep.subr.mxu0 0.0
    %220 = vmatpush1.msra.mxu0 %v186
    %221 = vmatprep.subr.mxu0 0.0
    %222 = vmatpush1.msra.mxu0 %v188
    %223 = vmatprep.subr.mxu0 0.0
    %224 = vmatpush1.msra.mxu0 %v190
    %225 = vmatprep.subr.mxu0 0.0
    %226 = vmatpush1.msra.mxu0 %v192
    %227 = vmatprep.subr.mxu0 0.0
    %228 = vmatpush1.msra.mxu0 %v194
    %229 = vmatprep.subr.mxu0 0.0
    %230 = vmatpush1.msra.mxu0 %v196
    %231 = vmatprep.subr.mxu0 0.0
    %232 = vmatpush1.msra.mxu0 %v198
    %233 = vmatprep.subr.mxu0 0.0
    %234 = vmatpush1.msra.mxu0 %v200
    %235 = vmatprep.subr.mxu0 0.0
    %236 = vmatpush1.msra.mxu0 0.0
    %237 = vmatprep.subr.mxu0 0.0
    %238 = vmatpush1.msra.mxu0 0.0
    %239 = vmatprep.subr.mxu0 0.0
    %240 = vmatpush1.msra.mxu0 0.0
    %241 = vmatprep.subr.mxu0 0.0
    %242 = vmatpush1.msra.mxu0 0.0
    %243 = vmatprep.subr.mxu0 0.0
    %244 = vmatpush1.msra.mxu0 0.0
    %245 = vmatprep.subr.mxu0 0.0
    %246 = vmatpush1.msra.mxu0 0.0
    %247 = vmatprep.subr.mxu0 0.0
    %248 = vmatpush1.msra.mxu0 0.0
    %249 = vmatprep.subr.mxu0 0.0
    %250 = vmatpush1.msra.mxu0 0.0
    %251 = vmatprep.subr.mxu0 0.0
    %252 = vmatpush1.msra.mxu0 0.0
    %253 = vmatprep.subr.mxu0 0.0
    %254 = vmatpush1.msra.mxu0 0.0
    %255 = vmatprep.subr.mxu0 0.0
    %256 = vmatpush1.msra.mxu0 0.0
    %257 = vmatprep.subr.mxu0 0.0
    %258 = vmatpush1.msra.mxu0 0.0
    %259 = vmatprep.subr.mxu0 0.0
    %260 = vmatpush1.msra.mxu0 0.0
    %261 = vmatprep.subr.mxu0 0.0
    %262 = vmatpush1.msra.mxu0 0.0
    %263 = vmatprep.subr.mxu0 0.0
    %264 = vmatpush1.msra.mxu0 0.0
    %265 = vmatprep.subr.mxu0 0.0
    %266 = vmatpush1.msra.mxu0 0.0
    %267 = vmatprep.mubr.f32.mxu0 0.0
    %268 = vmatmul.mubr.f32.gmra.mrb[0].mxu0 %v202
    %v269 = vpop.f32.mrb[0].mxu0
    %v270 = vadd.f32 0.0, %v269
    %v271 = vpop.f32.mrb[0].mxu0
    %272 = vdwg.mxu0
    %v273 = vadd.f32 %v201, %v270
    %274 = vst [vmem:[#allocation3] sm:$0xff] %v273
    // Predicated region
    $region34: #{tpu_custom_call.1} parent=1 // pred_check
      %p275 = pneg %p57
    $region35: #{tpu_custom_call.1} parent=1 // pred_check_branch
      %277 = sbr.rel (%p275) target = $region37
    $region36: #{tpu_custom_call.1} parent=1 // pred_region
      %v278 = vld [vmem:[#allocation3] sm:$0xff]
      %v279 = vadd.f32 %v278, 1e-16
      %v280 = vrsqrt.pop %v279
      %v281 = vmul.f32 %v279, %v280
      %vm282 = vcmp.eq.f32.partialorder %v279, inf
      %v283 = vsel %vm282, %v279, %v281
      %vm284 = vcmp.eq.f32.partialorder %v279, 0.0
      %v285 = vand.u32 %v279, 2147483648
      %v286 = vsel %vm284, %v285, %v283
      %v287 = vld [vmem:[#allocation2] sm:$0xff]
      %v288 = vld [vmem:[%s3] sm:$0xff]
      %v289 = vmul.f32 %v288, %v286
      %v290 = vadd.f32 %v287, %v289
      %291 = vst [vmem:[#allocation10] sm:$0xff] %v290
    $region37: #{tpu_custom_call.1} parent=1 // pred_fallthru
      _
    // Predicated region
    $region38: #{tpu_custom_call.1} parent=1 // pred_check
      _
    $region39: #{tpu_custom_call.1} parent=1 // pred_check_branch
      %293 = sbr.rel (0) target = $region41
    $region40: #{tpu_custom_call.1} parent=1 // pred_region
      %s295 = ssub.s32 128, 128
      %296 = vsyncadd [#allocation6], %s295
      %s298 = sshll.u32 [#allocation10], 4
      %s299 = int_to_ptr.vmem [resolvable:$true] %s298
      %301 = dma.vmem_to_hbm [thread:$0]  %s299, 128, %s4, [#allocation6]
    $region41: #{tpu_custom_call.1} parent=1 // pred_fallthru
      _
    // Predicated region
    $region42: #{tpu_custom_call.1} parent=1 // pred_check
      _
    $region43: #{tpu_custom_call.1} parent=1 // pred_check_branch
      %303 = sbr.rel (0) target = $region45
    $region44: #{tpu_custom_call.1} parent=1 // pred_region
      %304 = dma.done [#allocation6], 128
    $region45: #{tpu_custom_call.1} parent=1 // pred_fallthru
      _
    %305 = vsyncpa [#allocation5], 1
    %306 = vsyncpa [#allocation8], 1
    %307 = vsyncpa [#allocation6], 1

</llo_original>
